<compile_context>
chip_gen: v6e
topology: v6e:2x2x1
jax: 0.10.0
libtpu: 0.0.40
codegen_flags: <defaults>
</compile_context>

<pallas_src>
import jax
import jax.numpy as jnp
from jax.experimental import pallas as pl
from jax.experimental.pallas import tpu as pltpu


def _cdiv(a, b):
    return -(-a // b)


def _round_up(a, b):
    return _cdiv(a, b) * b


def _ae_kernel(x_ref, w1_ref, b1_ref, w23_ref, b23_ref, w4_ref, b4_ref, out_ref):
    """One batch tile of the fused autoencoder (batch-major layout).

    x_ref   : (tb, input_dim) streamed activation tile
    w*_ref  : small weight matrices, VMEM-resident across all grid steps
    b*_ref  : (1, out_features) f32 biases (broadcast along the batch sublanes)
    out_ref : (tb, input_dim) f32 reconstruction tile, written back batch-major
    """
    x = x_ref[...]

    # encoder Linear(input_dim, 16) + ReLU                          -> (tb, 16)
    h1 = jnp.dot(x, w1_ref[...], preferred_element_type=jnp.float32) + b1_ref[...]
    h1 = jnp.maximum(h1, 0.0)

    # fused encoder Linear(16, latent) . decoder Linear(latent, 16) + ReLU
    h2 = jnp.dot(h1.astype(w23_ref.dtype), w23_ref[...],
                 preferred_element_type=jnp.float32) + b23_ref[...]
    h2 = jnp.maximum(h2, 0.0)

    # decoder Linear(16, input_dim)                                 -> (tb, input_dim)
    # NOTE: if VALU ever becomes the bottleneck, fold b4 into the matmul by
    # appending a ones column to h2 and a bias row to w4 (rides the idle MXU).
    rec = jnp.dot(h2.astype(w4_ref.dtype), w4_ref[...],
                  preferred_element_type=jnp.float32) + b4_ref[...]

    out_ref[...] = rec.astype(out_ref.dtype)


def prepare_params(params, compute_dtype=jnp.float32):
    """One-time parameter preprocessing (hoisted out of every forward call).

    Algebraically fuses the two un-activated middle linears:
      (h1 @ w2 + b2) @ w3 + b3  ==  h1 @ (w2 @ w3) + (b2 @ w3 + b3)
    """
    f32 = jnp.float32
    w2 = params["w2"].astype(f32)
    w3 = params["w3"].astype(f32)
    w23 = w2 @ w3
    b23 = params["b2"].astype(f32) @ w3 + params["b3"].astype(f32)
    return {
        "w1": params["w1"].astype(compute_dtype),
        "b1": params["b1"].astype(f32),
        "w23": w23.astype(compute_dtype),
        "b23": b23.astype(f32),
        "w4": params["w4"].astype(compute_dtype),
        "b4": params["b4"].astype(f32),
    }


def _auto_block_rows(input_dim, x_itemsize, vmem_budget_bytes=24 << 20):
    """Pick a batch-tile row count so the double-buffered working set fits VMEM."""
    per_row = (2 * input_dim * x_itemsize   # streamed x tile, double-buffered
               + 2 * input_dim * 4          # f32 output tile, double-buffered
               + 3 * 16 * 4                 # h1 / h2 f32 intermediates
               + input_dim * 4)             # rec f32 temporary
    rows = vmem_budget_bytes // per_row
    return max(1024, (rows // 256) * 256)


def autoencoder_forward(x, prep, *, block_rows=None):
    """Forward pass.  x: (B, input_dim) -> (B, input_dim) f32, batch-major.

    The kernel streams x batch-major straight from HBM and writes the f32
    reconstruction batch-major — no wrapper-side pad / cast / transpose passes.
    """
    B, input_dim = x.shape

    if block_rows is None:
        block_rows = _auto_block_rows(input_dim, x.dtype.itemsize)

    # At least 2 tiles for reasonably sized batches so the "parallel" batch
    # axis can shard across the two TensorCores on v7x (harmless elsewhere).
    min_tiles = 2 if B >= 2048 else 1
    num_tiles = max(_cdiv(B, block_rows), min_tiles)
    tb = _round_up(_cdiv(B, num_tiles), 8)
    if tb >= B:                        # tiny batch: one full-extent tile
        tb, num_tiles = B, 1
    else:
        num_tiles = _cdiv(B, tb)       # ragged last tile handled by Pallas masking

    def _const_spec(a):
        return pl.BlockSpec(a.shape, lambda i: (0, 0))

    return pl.pallas_call(
        _ae_kernel,
        out_shape=jax.ShapeDtypeStruct((B, input_dim), jnp.float32),
        grid=(num_tiles,),
        in_specs=[
            pl.BlockSpec((tb, input_dim), lambda i: (i, 0)),   # streamed x tile
            _const_spec(prep["w1"]), _const_spec(prep["b1"]),
            _const_spec(prep["w23"]), _const_spec(prep["b23"]),
            _const_spec(prep["w4"]), _const_spec(prep["b4"]),
        ],
        out_specs=pl.BlockSpec((tb, input_dim), lambda i: (i, 0)),
        compiler_params=pltpu.CompilerParams(
            dimension_semantics=("parallel",),
            vmem_limit_bytes=48 * 1024 * 1024,
        ),
    )(x, prep["w1"], prep["b1"], prep["w23"], prep["b23"],
      prep["w4"], prep["b4"])


def init_params(key, input_dim, latent_dim, hidden=16):
    """PyTorch-style uniform fan-in init. Weights stored (in, out); biases (1, out)."""
    def linear(k, fan_in, fan_out):
        kw, kb = jax.random.split(k)
        bound = 1.0 / jnp.sqrt(fan_in)
        w = jax.random.uniform(kw, (fan_in, fan_out), jnp.float32, -bound, bound)
        b = jax.random.uniform(kb, (1, fan_out), jnp.float32, -bound, bound)
        return w, b

    k1, k2, k3, k4 = jax.random.split(key, 4)
    w1, b1 = linear(k1, input_dim, hidden)      # encoder Linear(input_dim, 16)
    w2, b2 = linear(k2, hidden, latent_dim)     # encoder Linear(16, latent_dim)
    w3, b3 = linear(k3, latent_dim, hidden)     # decoder Linear(latent_dim, 16)
    w4, b4 = linear(k4, hidden, input_dim)      # decoder Linear(16, input_dim)
    return {"w1": w1, "b1": b1, "w2": w2, "b2": b2,
            "w3": w3, "b3": b3, "w4": w4, "b4": b4}


def autoencoder_ref(x, p):
    """Pure-JAX f32 reference (unfused, matches the PyTorch module)."""
    h1 = jnp.maximum(x @ p["w1"] + p["b1"], 0.0)
    z = h1 @ p["w2"] + p["b2"]
    h2 = jnp.maximum(z @ p["w3"] + p["b3"], 0.0)
    return h2 @ p["w4"] + p["b4"]


if __name__ == "__main__":
    key = jax.random.PRNGKey(0)
    k_x, k_p, k_x2 = jax.random.split(key, 3)

    batch, input_dim, latent_dim = 8, 32, 8
    x = jax.random.normal(k_x, (batch, input_dim), jnp.float32)
    params = init_params(k_p, input_dim, latent_dim)
    prep = prepare_params(params)     # one-time parameter preprocessing

    # Single-tile path (tiny batch).
    recon = jax.block_until_ready(autoencoder_forward(x, prep))
    ref = autoencoder_ref(x, params)
    assert recon.shape == (batch, input_dim)
    assert recon.dtype == jnp.float32
    assert bool(jnp.allclose(recon, ref, atol=1e-2, rtol=1e-2))

    # Multi-tile path with a ragged last tile (exercises grid + OOB write masking).
    batch2 = 300
    x2 = jax.random.normal(k_x2, (batch2, input_dim), jnp.float32)
    recon2 = jax.block_until_ready(autoencoder_forward(x2, prep, block_rows=128))
    ref2 = autoencoder_ref(x2, params)
    assert recon2.shape == (batch2, input_dim)
    assert bool(jnp.allclose(recon2, ref2, atol=1e-2, rtol=1e-2))

    print("KERNEL_OK")
</pallas_src>

<mosaic_0001>
module attributes {stable_mosaic.version = 11 : i64} {
  func.func @_ae_kernel(%arg0: i32, %arg1: memref<8x32xf32, #tpu.memory_space<vmem>>, %arg2: memref<32x16xf32, #tpu.memory_space<vmem>>, %arg3: memref<1x16xf32, #tpu.memory_space<vmem>>, %arg4: memref<16x16xf32, #tpu.memory_space<vmem>>, %arg5: memref<1x16xf32, #tpu.memory_space<vmem>>, %arg6: memref<16x32xf32, #tpu.memory_space<vmem>>, %arg7: memref<1x32xf32, #tpu.memory_space<vmem>>, %arg8: memref<8x32xf32, #tpu.memory_space<vmem>>) attributes {dimension_semantics = [#tpu.dimension_semantics<parallel>], iteration_bounds = array<i64: 1>, scalar_prefetch = 0 : i64, scratch_operands = 0 : i64, tpu.core_type = #tpu.core_type<tc>, window_params = [{transform_indices = @transform_0, window_bounds = array<i64: 8, 32>}, {pipeline_mode = #tpu.pipeline_mode<synchronous>, transform_indices = @transform_1, window_bounds = array<i64: 32, 16>}, {pipeline_mode = #tpu.pipeline_mode<synchronous>, transform_indices = @transform_2, window_bounds = array<i64: 1, 16>}, {pipeline_mode = #tpu.pipeline_mode<synchronous>, transform_indices = @transform_3, window_bounds = array<i64: 16, 16>}, {pipeline_mode = #tpu.pipeline_mode<synchronous>, transform_indices = @transform_4, window_bounds = array<i64: 1, 16>}, {pipeline_mode = #tpu.pipeline_mode<synchronous>, transform_indices = @transform_5, window_bounds = array<i64: 16, 32>}, {pipeline_mode = #tpu.pipeline_mode<synchronous>, transform_indices = @transform_6, window_bounds = array<i64: 1, 32>}, {transform_indices = @transform_7, window_bounds = array<i64: 8, 32>}]} {
    %c0 = arith.constant 0 : index
    %c0_0 = arith.constant 0 : index
    %0 = vector.load %arg1[%c0, %c0_0] : memref<8x32xf32, #tpu.memory_space<vmem>>, vector<8x32xf32>
    %c0_1 = arith.constant 0 : index
    %c0_2 = arith.constant 0 : index
    %1 = vector.load %arg2[%c0_1, %c0_2] : memref<32x16xf32, #tpu.memory_space<vmem>>, vector<32x16xf32>
    %cst = arith.constant dense<0.000000e+00> : vector<8x16xf32>
    %2 = tpu.matmul %0, %1, %cst {dimension_numbers = #tpu.dot_dimension_numbers<[1], [0], [0], [1], [0, 0, 1, 1], [], []>} : vector<8x32xf32>, vector<32x16xf32>, vector<8x16xf32> -> vector<8x16xf32>
    %c0_3 = arith.constant 0 : index
    %c0_4 = arith.constant 0 : index
    %3 = vector.load %arg3[%c0_3, %c0_4] : memref<1x16xf32, #tpu.memory_space<vmem>>, vector<1x16xf32>
    %4 = vector.broadcast %3 : vector<1x16xf32> to vector<8x16xf32>
    %5 = arith.addf %2, %4 : vector<8x16xf32>
    %cst_5 = arith.constant 0.000000e+00 : f32
    %6 = vector.broadcast %cst_5 : f32 to vector<8x16xf32>
    %7 = arith.maximumf %5, %6 : vector<8x16xf32>
    %c0_6 = arith.constant 0 : index
    %c0_7 = arith.constant 0 : index
    %8 = vector.load %arg4[%c0_6, %c0_7] : memref<16x16xf32, #tpu.memory_space<vmem>>, vector<16x16xf32>
    %cst_8 = arith.constant dense<0.000000e+00> : vector<8x16xf32>
    %9 = tpu.matmul %7, %8, %cst_8 {dimension_numbers = #tpu.dot_dimension_numbers<[1], [0], [0], [1], [0, 0, 1, 1], [], []>} : vector<8x16xf32>, vector<16x16xf32>, vector<8x16xf32> -> vector<8x16xf32>
    %c0_9 = arith.constant 0 : index
    %c0_10 = arith.constant 0 : index
    %10 = vector.load %arg5[%c0_9, %c0_10] : memref<1x16xf32, #tpu.memory_space<vmem>>, vector<1x16xf32>
    %11 = vector.broadcast %10 : vector<1x16xf32> to vector<8x16xf32>
    %12 = arith.addf %9, %11 : vector<8x16xf32>
    %cst_11 = arith.constant 0.000000e+00 : f32
    %13 = vector.broadcast %cst_11 : f32 to vector<8x16xf32>
    %14 = arith.maximumf %12, %13 : vector<8x16xf32>
    %c0_12 = arith.constant 0 : index
    %c0_13 = arith.constant 0 : index
    %15 = vector.load %arg6[%c0_12, %c0_13] : memref<16x32xf32, #tpu.memory_space<vmem>>, vector<16x32xf32>
    %cst_14 = arith.constant dense<0.000000e+00> : vector<8x32xf32>
    %16 = tpu.matmul %14, %15, %cst_14 {dimension_numbers = #tpu.dot_dimension_numbers<[1], [0], [0], [1], [0, 0, 1, 1], [], []>} : vector<8x16xf32>, vector<16x32xf32>, vector<8x32xf32> -> vector<8x32xf32>
    %c0_15 = arith.constant 0 : index
    %c0_16 = arith.constant 0 : index
    %17 = vector.load %arg7[%c0_15, %c0_16] : memref<1x32xf32, #tpu.memory_space<vmem>>, vector<1x32xf32>
    %18 = vector.broadcast %17 : vector<1x32xf32> to vector<8x32xf32>
    %19 = arith.addf %16, %18 : vector<8x32xf32>
    %c0_17 = arith.constant 0 : index
    %c0_18 = arith.constant 0 : index
    %20 = vector.load %arg8[%c0_17, %c0_18] : memref<8x32xf32, #tpu.memory_space<vmem>>, vector<8x32xf32>
    tpu.vector_store %arg8[%c0_17, %c0_18], %19 {strides = array<i32>} : memref<8x32xf32, #tpu.memory_space<vmem>>, vector<8x32xf32>,
    return
  }
  func.func @transform_0(%arg0: i32) -> (i32, i32) {
    %c0_i32 = arith.constant 0 : i32
    %c0_i32_0 = arith.constant 0 : i32
    return %arg0, %c0_i32 : i32, i32
  }
  func.func @transform_1(%arg0: i32) -> (i32, i32) {
    %c0_i32 = arith.constant 0 : i32
    %c0_i32_0 = arith.constant 0 : i32
    %c0_i32_1 = arith.constant 0 : i32
    return %c0_i32, %c0_i32_0 : i32, i32
  }
  func.func @transform_2(%arg0: i32) -> (i32, i32) {
    %c0_i32 = arith.constant 0 : i32
    %c0_i32_0 = arith.constant 0 : i32
    %c0_i32_1 = arith.constant 0 : i32
    return %c0_i32, %c0_i32_0 : i32, i32
  }
  func.func @transform_3(%arg0: i32) -> (i32, i32) {
    %c0_i32 = arith.constant 0 : i32
    %c0_i32_0 = arith.constant 0 : i32
    %c0_i32_1 = arith.constant 0 : i32
    return %c0_i32, %c0_i32_0 : i32, i32
  }
  func.func @transform_4(%arg0: i32) -> (i32, i32) {
    %c0_i32 = arith.constant 0 : i32
    %c0_i32_0 = arith.constant 0 : i32
    %c0_i32_1 = arith.constant 0 : i32
    return %c0_i32, %c0_i32_0 : i32, i32
  }
  func.func @transform_5(%arg0: i32) -> (i32, i32) {
    %c0_i32 = arith.constant 0 : i32
    %c0_i32_0 = arith.constant 0 : i32
    %c0_i32_1 = arith.constant 0 : i32
    return %c0_i32, %c0_i32_0 : i32, i32
  }
  func.func @transform_6(%arg0: i32) -> (i32, i32) {
    %c0_i32 = arith.constant 0 : i32
    %c0_i32_0 = arith.constant 0 : i32
    %c0_i32_1 = arith.constant 0 : i32
    return %c0_i32, %c0_i32_0 : i32, i32
  }
  func.func @transform_7(%arg0: i32) -> (i32, i32) {
    %c0_i32 = arith.constant 0 : i32
    %c0_i32_0 = arith.constant 0 : i32
    return %arg0, %c0_i32 : i32, i32
  }
}

</mosaic_0001>

<llo_original>
// kernel: tpu_custom_call.1
$region0: #{tpu_custom_call.1}
  #allocation0 [shape = 'u32[]', space=smem, size = 0x4, offset = 0x4, fixed_abs, tag = 'smem constant byte address 0x4 - core index']
  #allocation1 [shape = 'u32[144,128]{1,0:T(1,128)}', space=vmem, size = 0x12000, scoped, tag = 'internal scratch']
  %s0 = inlined_call_operand.vmem [shape: f32[8,32], index: 0, kind: input, shape index: {}]
  %s1 = inlined_call_operand.vmem [shape: f32[32,16], index: 1, kind: input, shape index: {}]
  %s2 = inlined_call_operand.vmem [shape: f32[1,16], index: 2, kind: input, shape index: {}]
  %s3 = inlined_call_operand.vmem [shape: f32[16,16], index: 3, kind: input, shape index: {}]
  %s4 = inlined_call_operand.vmem [shape: f32[1,16], index: 4, kind: input, shape index: {}]
  %s5 = inlined_call_operand.vmem [shape: f32[16,32], index: 5, kind: input, shape index: {}]
  %s6 = inlined_call_operand.vmem [shape: f32[1,32], index: 6, kind: input, shape index: {}]
  %s7 = inlined_call_operand.hbm [shape: f32[8,32], index: 7, kind: output, shape index: {}]
  %s8 = sld [smem:[#allocation0]]
  $region38: #{tpu_custom_call.1} parent=0
    _
  %s10 = ssub.s32 1, %s8
  %s11 = scalar_select 0, %s10, %s8
  $region1: #{tpu_custom_call.1} parent=0
    #allocation2 [shape = 'u8[4096]{0}', space=vmem, size = 0x1000, scoped, tag = 'output window, operand 0, single buffered']
    #allocation3 [shape = 's32[1]{0}', space=sflag, size = 0x4, scoped, tag = 'scoped memory for tpu_custom_call.1']
    %12 = vsyncpa [#allocation3], 0
    // Predicated region
    $region2: #{tpu_custom_call.1} parent=1 // pred_check
      _
    $region3: #{tpu_custom_call.1} parent=1 // pred_check_branch
      %14 = sbr.rel (0) target = $region5
    $region4: #{tpu_custom_call.1} parent=1 // pred_region
      _
    $region5: #{tpu_custom_call.1} parent=1 // pred_fallthru
      _
    // Predicated region
    $region6: #{tpu_custom_call.1} parent=1 // pred_check
      _
    $region7: #{tpu_custom_call.1} parent=1 // pred_check_branch
      %16 = sbr.rel (0) target = $region9
    $region8: #{tpu_custom_call.1} parent=1 // pred_region
      _
    $region9: #{tpu_custom_call.1} parent=1 // pred_fallthru
      _
    // Predicated region
    $region10: #{tpu_custom_call.1} parent=1 // pred_check
      _
    $region11: #{tpu_custom_call.1} parent=1 // pred_check_branch
      %18 = sbr.rel (0) target = $region13
    $region12: #{tpu_custom_call.1} parent=1 // pred_region
      _
    $region13: #{tpu_custom_call.1} parent=1 // pred_fallthru
      _
    // Predicated region
    $region14: #{tpu_custom_call.1} parent=1 // pred_check
      _
    $region15: #{tpu_custom_call.1} parent=1 // pred_check_branch
      %20 = sbr.rel (0) target = $region17
    $region16: #{tpu_custom_call.1} parent=1 // pred_region
      _
    $region17: #{tpu_custom_call.1} parent=1 // pred_fallthru
      _
    // Predicated region
    $region18: #{tpu_custom_call.1} parent=1 // pred_check
      _
    $region19: #{tpu_custom_call.1} parent=1 // pred_check_branch
      %22 = sbr.rel (0) target = $region21
    $region20: #{tpu_custom_call.1} parent=1 // pred_region
      _
    $region21: #{tpu_custom_call.1} parent=1 // pred_fallthru
      _
    // Predicated region
    $region22: #{tpu_custom_call.1} parent=1 // pred_check
      _
    $region23: #{tpu_custom_call.1} parent=1 // pred_check_branch
      %24 = sbr.rel (0) target = $region25
    $region24: #{tpu_custom_call.1} parent=1 // pred_region
      _
    $region25: #{tpu_custom_call.1} parent=1 // pred_fallthru
      _
    // Predicated region
    $region26: #{tpu_custom_call.1} parent=1 // pred_check
      _
    $region27: #{tpu_custom_call.1} parent=1 // pred_check_branch
      %26 = sbr.rel (0) target = $region29
    $region28: #{tpu_custom_call.1} parent=1 // pred_region
      _
    $region29: #{tpu_custom_call.1} parent=1 // pred_fallthru
      _
    %v27 = vld [vmem:[%s0] sm:$0xff]
    %v28 = vld [vmem:[%s1] sm:$0xff]
    %v29 = vld [vmem:[%s1 + $0x8] sm:$0xff]
    %v30 = vld [vmem:[%s1 + $0x10] sm:$0xff]
    %v31 = vld [vmem:[%s1 + $0x18] sm:$0xff]
    %v32 = vld [vmem:[%s2] sm:$0x1]
    %v34 = vlaneseq
    %v35 = vshrl.u32 %v34, 7
    %v36 = vsub.s32 0, %v35
    %v37 = vrot.slane %v32, %v36
    %vm39 = vcmask 261120
    %v41 = vsel %vm39, %v27, 0
    %43 = vmatprep.subr.mxu0 0.0
    %44 = vmatpush1.msra.mxu0 0.0
    %45 = vmatprep.subr.mxu0 0.0
    %46 = vmatpush1.msra.mxu0 0.0
    %47 = vmatprep.subr.mxu0 0.0
    %48 = vmatpush1.msra.mxu0 0.0
    %49 = vmatprep.subr.mxu0 0.0
    %50 = vmatpush1.msra.mxu0 0.0
    %51 = vmatprep.subr.mxu0 0.0
    %52 = vmatpush1.msra.mxu0 0.0
    %53 = vmatprep.subr.mxu0 0.0
    %54 = vmatpush1.msra.mxu0 0.0
    %55 = vmatprep.subr.mxu0 0.0
    %56 = vmatpush1.msra.mxu0 0.0
    %57 = vmatprep.subr.mxu0 0.0
    %58 = vmatpush1.msra.mxu0 0.0
    %59 = vmatprep.subr.mxu0 0.0
    %60 = vmatpush1.msra.mxu0 0.0
    %61 = vmatprep.subr.mxu0 0.0
    %62 = vmatpush1.msra.mxu0 0.0
    %63 = vmatprep.subr.mxu0 0.0
    %64 = vmatpush1.msra.mxu0 0.0
    %65 = vmatprep.subr.mxu0 0.0
    %66 = vmatpush1.msra.mxu0 0.0
    %67 = vmatprep.subr.mxu0 0.0
    %68 = vmatpush1.msra.mxu0 %v31
    %69 = vmatprep.subr.mxu0 0.0
    %70 = vmatpush1.msra.mxu0 %v30
    %71 = vmatprep.subr.mxu0 0.0
    %72 = vmatpush1.msra.mxu0 %v29
    %73 = vmatprep.subr.mxu0 0.0
    %74 = vmatpush1.msra.mxu0 %v28
    %75 = vmatprep.subr.mxu0 0.0
    %76 = vmatpush2.msra.mxu0 0.0
    %77 = vmatprep.subr.mxu0 0.0
    %78 = vmatpush2.msra.mxu0 0.0
    %79 = vmatprep.subr.mxu0 0.0
    %80 = vmatpush2.msra.mxu0 0.0
    %81 = vmatprep.subr.mxu0 0.0
    %82 = vmatpush2.msra.mxu0 0.0
    %83 = vmatprep.subr.mxu0 0.0
    %84 = vmatpush2.msra.mxu0 0.0
    %85 = vmatprep.subr.mxu0 0.0
    %86 = vmatpush2.msra.mxu0 0.0
    %87 = vmatprep.subr.mxu0 0.0
    %88 = vmatpush2.msra.mxu0 0.0
    %89 = vmatprep.subr.mxu0 0.0
    %90 = vmatpush2.msra.mxu0 0.0
    %91 = vmatprep.subr.mxu0 0.0
    %92 = vmatpush2.msra.mxu0 0.0
    %93 = vmatprep.subr.mxu0 0.0
    %94 = vmatpush2.msra.mxu0 0.0
    %95 = vmatprep.subr.mxu0 0.0
    %96 = vmatpush2.msra.mxu0 0.0
    %97 = vmatprep.subr.mxu0 0.0
    %98 = vmatpush2.msra.mxu0 0.0
    %99 = vmatprep.subr.mxu0 0.0
    %100 = vmatpush2.msra.mxu0 0.0
    %101 = vmatprep.subr.mxu0 0.0
    %102 = vmatpush2.msra.mxu0 0.0
    %103 = vmatprep.subr.mxu0 0.0
    %104 = vmatpush2.msra.mxu0 0.0
    %105 = vmatprep.subr.mxu0 0.0
    %106 = vmatpush2.msra.mxu0 0.0
    %107 = vmatprep.mubr.f32.mxu0 0.0
    %108 = vmatmul.mubr.f32.gmra.mxu0 %v41
    %v109 = vpop.f32.mrf.mxu0
    %v110 = vadd.f32 %v37, %v109
    %v111 = vpop.f32.mrf.mxu0
    %112 = vdwg.mxu0
    %v113 = vmax.f32 %v110, 0.0
    %v114 = vld [vmem:[%s3] sm:$0xff]
    %v115 = vld [vmem:[%s3 + $0x8] sm:$0xff]
    %v116 = vld [vmem:[%s4] sm:$0x1]
    %v118 = vlaneseq
    %v119 = vshrl.u32 %v118, 7
    %v120 = vsub.s32 0, %v119
    %v121 = vrot.slane %v116, %v120
    %vm123 = vcmask 130048
    %v125 = vsel %vm123, %v113, 0
    %127 = vmatprep.subr.mxu0 0.0
    %128 = vmatpush1.msra.mxu0 0.0
    %129 = vmatprep.subr.mxu0 0.0
    %130 = vmatpush1.msra.mxu0 0.0
    %131 = vmatprep.subr.mxu0 0.0
    %132 = vmatpush1.msra.mxu0 0.0
    %133 = vmatprep.subr.mxu0 0.0
    %134 = vmatpush1.msra.mxu0 0.0
    %135 = vmatprep.subr.mxu0 0.0
    %136 = vmatpush1.msra.mxu0 0.0
    %137 = vmatprep.subr.mxu0 0.0
    %138 = vmatpush1.msra.mxu0 0.0
    %139 = vmatprep.subr.mxu0 0.0
    %140 = vmatpush1.msra.mxu0 0.0
    %141 = vmatprep.subr.mxu0 0.0
    %142 = vmatpush1.msra.mxu0 0.0
    %143 = vmatprep.subr.mxu0 0.0
    %144 = vmatpush1.msra.mxu0 0.0
    %145 = vmatprep.subr.mxu0 0.0
    %146 = vmatpush1.msra.mxu0 0.0
    %147 = vmatprep.subr.mxu0 0.0
    %148 = vmatpush1.msra.mxu0 0.0
    %149 = vmatprep.subr.mxu0 0.0
    %150 = vmatpush1.msra.mxu0 0.0
    %151 = vmatprep.subr.mxu0 0.0
    %152 = vmatpush1.msra.mxu0 0.0
    %153 = vmatprep.subr.mxu0 0.0
    %154 = vmatpush1.msra.mxu0 0.0
    %155 = vmatprep.subr.mxu0 0.0
    %156 = vmatpush1.msra.mxu0 %v115
    %157 = vmatprep.subr.mxu0 0.0
    %158 = vmatpush1.msra.mxu0 %v114
    %159 = vmatprep.subr.mxu0 0.0
    %160 = vmatpush2.msra.mxu0 0.0
    %161 = vmatprep.subr.mxu0 0.0
    %162 = vmatpush2.msra.mxu0 0.0
    %163 = vmatprep.subr.mxu0 0.0
    %164 = vmatpush2.msra.mxu0 0.0
    %165 = vmatprep.subr.mxu0 0.0
    %166 = vmatpush2.msra.mxu0 0.0
    %167 = vmatprep.subr.mxu0 0.0
    %168 = vmatpush2.msra.mxu0 0.0
    %169 = vmatprep.subr.mxu0 0.0
    %170 = vmatpush2.msra.mxu0 0.0
    %171 = vmatprep.subr.mxu0 0.0
    %172 = vmatpush2.msra.mxu0 0.0
    %173 = vmatprep.subr.mxu0 0.0
    %174 = vmatpush2.msra.mxu0 0.0
    %175 = vmatprep.subr.mxu0 0.0
    %176 = vmatpush2.msra.mxu0 0.0
    %177 = vmatprep.subr.mxu0 0.0
    %178 = vmatpush2.msra.mxu0 0.0
    %179 = vmatprep.subr.mxu0 0.0
    %180 = vmatpush2.msra.mxu0 0.0
    %181 = vmatprep.subr.mxu0 0.0
    %182 = vmatpush2.msra.mxu0 0.0
    %183 = vmatprep.subr.mxu0 0.0
    %184 = vmatpush2.msra.mxu0 0.0
    %185 = vmatprep.subr.mxu0 0.0
    %186 = vmatpush2.msra.mxu0 0.0
    %187 = vmatprep.subr.mxu0 0.0
    %188 = vmatpush2.msra.mxu0 0.0
    %189 = vmatprep.subr.mxu0 0.0
    %190 = vmatpush2.msra.mxu0 0.0
    %191 = vmatprep.mubr.f32.mxu0 0.0
    %192 = vmatmul.mubr.f32.gmra.mxu0 %v125
    %v193 = vpop.f32.mrf.mxu0
    %v194 = vadd.f32 %v121, %v193
    %v195 = vpop.f32.mrf.mxu0
    %196 = vdwg.mxu0
    %v197 = vmax.f32 %v194, 0.0
    %v198 = vld [vmem:[%s5] sm:$0xff]
    %v199 = vld [vmem:[%s5 + $0x8] sm:$0xff]
    %v200 = vld [vmem:[%s6] sm:$0x1]
    %v202 = vlaneseq
    %v203 = vshrl.u32 %v202, 7
    %v204 = vsub.s32 0, %v203
    %v205 = vrot.slane %v200, %v204
    %v208 = vsel %vm123, %v197, 0
    %210 = vmatprep.subr.mxu0 0.0
    %211 = vmatpush1.msra.mxu0 0.0
    %212 = vmatprep.subr.mxu0 0.0
    %213 = vmatpush1.msra.mxu0 0.0
    %214 = vmatprep.subr.mxu0 0.0
    %215 = vmatpush1.msra.mxu0 0.0
    %216 = vmatprep.subr.mxu0 0.0
    %217 = vmatpush1.msra.mxu0 0.0
    %218 = vmatprep.subr.mxu0 0.0
    %219 = vmatpush1.msra.mxu0 0.0
    %220 = vmatprep.subr.mxu0 0.0
    %221 = vmatpush1.msra.mxu0 0.0
    %222 = vmatprep.subr.mxu0 0.0
    %223 = vmatpush1.msra.mxu0 0.0
    %224 = vmatprep.subr.mxu0 0.0
    %225 = vmatpush1.msra.mxu0 0.0
    %226 = vmatprep.subr.mxu0 0.0
    %227 = vmatpush1.msra.mxu0 0.0
    %228 = vmatprep.subr.mxu0 0.0
    %229 = vmatpush1.msra.mxu0 0.0
    %230 = vmatprep.subr.mxu0 0.0
    %231 = vmatpush1.msra.mxu0 0.0
    %232 = vmatprep.subr.mxu0 0.0
    %233 = vmatpush1.msra.mxu0 0.0
    %234 = vmatprep.subr.mxu0 0.0
    %235 = vmatpush1.msra.mxu0 0.0
    %236 = vmatprep.subr.mxu0 0.0
    %237 = vmatpush1.msra.mxu0 0.0
    %238 = vmatprep.subr.mxu0 0.0
    %239 = vmatpush1.msra.mxu0 %v199
    %240 = vmatprep.subr.mxu0 0.0
    %241 = vmatpush1.msra.mxu0 %v198
    %242 = vmatprep.subr.mxu0 0.0
    %243 = vmatpush2.msra.mxu0 0.0
    %244 = vmatprep.subr.mxu0 0.0
    %245 = vmatpush2.msra.mxu0 0.0
    %246 = vmatprep.subr.mxu0 0.0
    %247 = vmatpush2.msra.mxu0 0.0
    %248 = vmatprep.subr.mxu0 0.0
    %249 = vmatpush2.msra.mxu0 0.0
    %250 = vmatprep.subr.mxu0 0.0
    %251 = vmatpush2.msra.mxu0 0.0
    %252 = vmatprep.subr.mxu0 0.0
    %253 = vmatpush2.msra.mxu0 0.0
    %254 = vmatprep.subr.mxu0 0.0
    %255 = vmatpush2.msra.mxu0 0.0
    %256 = vmatprep.subr.mxu0 0.0
    %257 = vmatpush2.msra.mxu0 0.0
    %258 = vmatprep.subr.mxu0 0.0
    %259 = vmatpush2.msra.mxu0 0.0
    %260 = vmatprep.subr.mxu0 0.0
    %261 = vmatpush2.msra.mxu0 0.0
    %262 = vmatprep.subr.mxu0 0.0
    %263 = vmatpush2.msra.mxu0 0.0
    %264 = vmatprep.subr.mxu0 0.0
    %265 = vmatpush2.msra.mxu0 0.0
    %266 = vmatprep.subr.mxu0 0.0
    %267 = vmatpush2.msra.mxu0 0.0
    %268 = vmatprep.subr.mxu0 0.0
    %269 = vmatpush2.msra.mxu0 0.0
    %270 = vmatprep.subr.mxu0 0.0
    %271 = vmatpush2.msra.mxu0 0.0
    %272 = vmatprep.subr.mxu0 0.0
    %273 = vmatpush2.msra.mxu0 0.0
    %274 = vmatprep.mubr.f32.mxu0 0.0
    %275 = vmatmul.mubr.f32.gmra.mxu0 %v208
    %v276 = vpop.f32.mrf.mxu0
    %v277 = vadd.f32 %v205, %v276
    %v278 = vpop.f32.mrf.mxu0
    %279 = vdwg.mxu0
    %280 = vst.msk [vmem:[#allocation2] sm:$0xff] %vm39, %v277
    // Predicated region
    $region30: #{tpu_custom_call.1} parent=1 // pred_check
      _
    $region31: #{tpu_custom_call.1} parent=1 // pred_check_branch
      %282 = sbr.rel (0) target = $region33
    $region32: #{tpu_custom_call.1} parent=1 // pred_region
      %s284 = ssub.s32 128, 128
      %285 = vsyncadd [#allocation3], %s284
      %s287 = sshll.u32 [#allocation2], 4
      %s288 = int_to_ptr.vmem [resolvable:$true] %s287
      %290 = dma.vmem_to_hbm [thread:$0]  %s288, 128, %s7, [#allocation3]
    $region33: #{tpu_custom_call.1} parent=1 // pred_fallthru
      _
    // Predicated region
    $region34: #{tpu_custom_call.1} parent=1 // pred_check
      _
    $region35: #{tpu_custom_call.1} parent=1 // pred_check_branch
      %292 = sbr.rel (0) target = $region37
    $region36: #{tpu_custom_call.1} parent=1 // pred_region
      %293 = dma.done [#allocation3], 128
    $region37: #{tpu_custom_call.1} parent=1 // pred_fallthru
      _
    %294 = vsyncpa [#allocation3], 1

</llo_original>
